<compile_context>
chip_gen: v7x
topology: tpu7x:2x2x1
jax: 0.10.0
libtpu: 0.0.40
codegen_flags: <defaults>
</compile_context>

<pallas_src>
import functools

import jax
import jax.numpy as jnp
from jax.experimental import pallas as pl
from jax.experimental.pallas import tpu as pltpu


def _round_up(n: int, m: int) -> int:
    return ((n + m - 1) // m) * m


# --------------------------------------------------------------------------- #
# Kernels
# --------------------------------------------------------------------------- #
def _mlp_kernel_direct(x_ref, w1_ref, w2_ref, o_ref, *, compute_dtype):
    """Full hidden dim resident: one (tm, E) tile -> (tm, E) output, no scratch."""
    x = x_ref[...].astype(compute_dtype)
    h = jnp.dot(x, w1_ref[...], preferred_element_type=jnp.float32)
    h = jnp.maximum(h, 0.0)
    h = h * h  # relu(.)^2 in f32 (v5e VPU has no bf16 elementwise path)
    o_ref[...] = jnp.dot(h.astype(compute_dtype), w2_ref[...],
                         preferred_element_type=jnp.float32).astype(o_ref.dtype)


def _mlp_kernel_chunked(x_ref, w1_ref, w2_ref, o_ref, xcast_ref, acc_ref, *,
                        compute_dtype):
    """One (tm, E) token tile x one th-wide hidden chunk.

    xcast_ref: (tm, E) bf16 scratch - x cast once per M tile (hc == 0).
    acc_ref:   (tm, E) f32 accumulator scratch across hidden chunks.
    """
    hc = pl.program_id(1)

    @pl.when(hc == 0)
    def _init():
        acc_ref[...] = jnp.zeros_like(acc_ref)
        xcast_ref[...] = x_ref[...].astype(compute_dtype)

    h = jnp.dot(xcast_ref[...], w1_ref[...], preferred_element_type=jnp.float32)
    h = jnp.maximum(h, 0.0)
    h = h * h
    acc_ref[...] += jnp.dot(h.astype(compute_dtype), w2_ref[...],
                            preferred_element_type=jnp.float32)

    @pl.when(hc == pl.num_programs(1) - 1)
    def _finalize():
        o_ref[...] = acc_ref[...].astype(o_ref.dtype)


# --------------------------------------------------------------------------- #
# Tiling / budgeting helpers (all init-time Python, never per grid step)
# --------------------------------------------------------------------------- #
def _vmem_capacity_bytes() -> int:
    try:
        info = pltpu.get_tpu_info()
        cap = getattr(info, "vmem_capacity_bytes", None)
        if cap:
            return int(cap)
    except Exception:  # noqa: BLE001  (query is advisory only)
        pass
    return 64 << 20  # conservative default (v7x per-TensorCore VMEM)


def _vmem_estimate(tm, E, th, x_bytes, out_bytes, c_bytes, chunked) -> int:
    weights = 2 * 2 * E * th * c_bytes            # w1 + w2 blocks, double-buffered
    io = 2 * tm * E * (x_bytes + out_bytes)       # x + out tiles, double-buffered
    hidden = tm * th * (4 + c_bytes)              # f32 hidden + bf16 copy for matmul 2
    if chunked:
        scratch = tm * E * (4 + c_bytes)          # f32 accumulator + bf16 x-cast scratch
    else:
        scratch = tm * E * c_bytes                # transient bf16 x copy
    return weights + io + hidden + scratch


def _pick_tm(M: int, tm_req: int):
    """Pick an M-tile: prefer one that divides M exactly (avoids jnp.pad)."""
    tm_req = max(8, min(_round_up(tm_req, 8), _round_up(M, 8)))
    for cand in range(tm_req, 7, -8):
        if M % cand == 0:
            return cand, M, False
    Mp = _round_up(M, tm_req)
    return tm_req, Mp, True


# --------------------------------------------------------------------------- #
# pallas_call wrappers
# --------------------------------------------------------------------------- #
def _call_direct(x2d, w1, w2, *, tm, out_dtype, vmem_limit, cost):
    Mp, E = x2d.shape
    H = w1.shape[1]
    kernel = functools.partial(_mlp_kernel_direct, compute_dtype=w1.dtype)
    return pl.pallas_call(
        kernel,
        out_shape=jax.ShapeDtypeStruct((Mp, E), out_dtype),
        grid_spec=pltpu.PrefetchScalarGridSpec(
            num_scalar_prefetch=0,
            grid=(Mp // tm,),
            in_specs=[
                pl.BlockSpec((tm, E), lambda i: (i, 0)),   # x tile
                pl.BlockSpec((E, H), lambda i: (0, 0)),    # c_fc^T  (grid-invariant)
                pl.BlockSpec((H, E), lambda i: (0, 0)),    # c_proj^T (grid-invariant)
            ],
            out_specs=pl.BlockSpec((tm, E), lambda i: (i, 0)),
        ),
        compiler_params=pltpu.CompilerParams(
            dimension_semantics=("parallel",),
            vmem_limit_bytes=vmem_limit,
        ),
        cost_estimate=cost,
    )(x2d, w1, w2)


def _call_chunked(x2d, w1, w2, *, tm, th, n_h, out_dtype, vmem_limit, cost):
    Mp, E = x2d.shape
    kernel = functools.partial(_mlp_kernel_chunked, compute_dtype=w1.dtype)
    # TODO(synk): on v7x, grid-invariant weights could live in pltpu.VMEM_SHARED
    # to avoid duplicating them across both TensorCores.
    return pl.pallas_call(
        kernel,
        out_shape=jax.ShapeDtypeStruct((Mp, E), out_dtype),
        grid_spec=pltpu.PrefetchScalarGridSpec(
            num_scalar_prefetch=0,
            grid=(Mp // tm, n_h),
            in_specs=[
                pl.BlockSpec((tm, E), lambda i, h: (i, 0)),   # x tile
                pl.BlockSpec((E, th), lambda i, h: (0, h)),   # c_fc^T chunk
                pl.BlockSpec((th, E), lambda i, h: (h, 0)),   # c_proj^T chunk
            ],
            out_specs=pl.BlockSpec((tm, E), lambda i, h: (i, 0)),
            scratch_shapes=[
                pltpu.VMEM((tm, E), w1.dtype),      # bf16 x-cast (hoisted cast)
                pltpu.VMEM((tm, E), jnp.float32),   # f32 accumulator
            ],
        ),
        compiler_params=pltpu.CompilerParams(
            dimension_semantics=("parallel", "arbitrary"),
            vmem_limit_bytes=vmem_limit,
        ),
        cost_estimate=cost,
    )(x2d, w1, w2)


# --------------------------------------------------------------------------- #
# Public wrappers
# --------------------------------------------------------------------------- #
def prepare_mlp_params(w_fc, w_proj, compute_dtype=jnp.bfloat16):
    """Init-time weight prep (do NOT call per forward pass).

    w_fc:   [4E, E]  PyTorch nn.Linear layout of c_fc.weight
    w_proj: [E, 4E]  PyTorch nn.Linear layout of c_proj.weight
    Returns (w1 [E,4E], w2 [4E,E]) transposed + cast to the MXU compute dtype.
    """
    w1 = jnp.asarray(w_fc).T.astype(compute_dtype)
    w2 = jnp.asarray(w_proj).T.astype(compute_dtype)
    return w1, w2


def mlp_forward(x, w1, w2, *, tm=None, th=None):
    """Fused MLP forward: relu(x @ w1)^2 @ w2.

    x:  [B, T, E] activations (output keeps this dtype).
    w1: [E, 4E], w2: [4E, E] from `prepare_mlp_params`.
    tm: token-tile rows (None = auto: 512, or larger in the chunked path).
    th: hidden-chunk width (None = auto). When chunking, th must be a multiple
        of 256 (>= 512 recommended for full v6e/v7x MXU utilization).
    """
    B, T, E = x.shape
    E_w, H = w1.shape
    assert E_w == E and w2.shape == (H, E), "weight shapes must be [E,4E]/[4E,E]"
    assert w1.dtype == w2.dtype

    M = B * T
    out_dtype = x.dtype
    x_bytes = x.dtype.itemsize
    out_bytes = out_dtype.itemsize if hasattr(out_dtype, "itemsize") else \
        jnp.dtype(out_dtype).itemsize
    c_bytes = w1.dtype.itemsize

    vmem_cap = _vmem_capacity_bytes()
    budget = vmem_cap - (10 << 20)  # headroom for Mosaic internal scratch etc.

    tm_req = 512 if tm is None else int(tm)
    tm_eff, Mp, need_pad = _pick_tm(M, tm_req)

    # ---- decide hidden-dim chunking --------------------------------------- #
    if th is None:
        if _vmem_estimate(tm_eff, E, H, x_bytes, out_bytes, c_bytes,
                          chunked=False) <= budget:
            th_eff, n_h = H, 1
        else:
            # Auto-chunk: largest multiple of 256 dividing H that fits VMEM.
            cands = [c for c in range(H - (H % 256), 255, -256) if H % c == 0]
            th_eff = None
            for c in cands:
                if _vmem_estimate(tm_eff, E, c, x_bytes, out_bytes, c_bytes,
                                  chunked=True) <= budget:
                    th_eff = c
                    break
            if th_eff is None:
                th_eff = cands[-1] if cands else H  # smallest available chunk
            n_h = H // th_eff
            # Bump tm to amortize per-M-tile weight re-streams when it fits.
            if tm is None and n_h > 1:
                for cand_tm in (2048, 1024):
                    if (M % cand_tm == 0 and cand_tm > tm_eff and
                            _vmem_estimate(cand_tm, E, th_eff, x_bytes,
                                           out_bytes, c_bytes,
                                           chunked=True) <= budget):
                        tm_eff, Mp, need_pad = cand_tm, M, False
                        break
    else:
        th_eff = int(th)
        assert H % th_eff == 0, "th must divide the hidden dim"
        assert th_eff == H or th_eff % 256 == 0, \
            "chunk width must be a multiple of 256 (>=512 recommended)"
        n_h = H // th_eff

    chunked = n_h > 1

    # ---- VMEM limit (generation-aware cap) -------------------------------- #
    est = _vmem_estimate(tm_eff, E, th_eff, x_bytes, out_bytes, c_bytes, chunked)
    vmem_limit = int(min(vmem_cap - (2 << 20),
                         max(32 << 20, int(est * 1.4) + (4 << 20))))

    # ---- cost estimate for XLA scheduling --------------------------------- #
    weight_stream_bytes = 2 * E * H * c_bytes * (1 if not chunked else Mp // tm_eff)
    cost = pl.CostEstimate(
        flops=4 * M * E * H,  # two matmuls, 2*M*E*H flops each
        transcendentals=0,
        bytes_accessed=M * E * x_bytes + M * E * out_bytes + weight_stream_bytes,
    )

    # ---- run --------------------------------------------------------------- #
    x2d = x.reshape(M, E)
    if need_pad:
        x2d = jnp.pad(x2d, ((0, Mp - M), (0, 0)))

    if chunked:
        out2d = _call_chunked(x2d, w1, w2, tm=tm_eff, th=th_eff, n_h=n_h,
                              out_dtype=out_dtype, vmem_limit=vmem_limit,
                              cost=cost)
    else:
        out2d = _call_direct(x2d, w1, w2, tm=tm_eff, out_dtype=out_dtype,
                             vmem_limit=vmem_limit, cost=cost)

    if need_pad:
        out2d = out2d[:M]
    return out2d.reshape(B, T, E)


# --------------------------------------------------------------------------- #
# References
# --------------------------------------------------------------------------- #
def mlp_reference(x, w_fc, w_proj):
    """Pure f32 reference of the PyTorch module (PyTorch weight layouts)."""
    h = jnp.einsum("bte,he->bth", x, w_fc)
    h = jnp.square(jnp.maximum(h, 0.0))
    return jnp.einsum("bth,eh->bte", h, w_proj)


def mlp_reference_bf16(x, w_fc, w_proj):
    """Reference mirroring the kernel's bf16-input / f32-accumulate numerics."""
    xb = x.astype(jnp.bfloat16)
    h = jnp.einsum("bte,he->bth", xb, w_fc.astype(jnp.bfloat16),
                   preferred_element_type=jnp.float32)
    h = jnp.square(jnp.maximum(h, 0.0)).astype(jnp.bfloat16)
    return jnp.einsum("bth,eh->bte", h, w_proj.astype(jnp.bfloat16),
                      preferred_element_type=jnp.float32)


if __name__ == "__main__":
    # ---- 1) small config matching the module: n_embd=32 -> hidden=128 ------
    B, T, E = 2, 8, 32
    H = 4 * E
    key = jax.random.PRNGKey(0)
    kx, k1, k2 = jax.random.split(key, 3)
    x = jax.random.normal(kx, (B, T, E), dtype=jnp.float32)
    # PyTorch nn.Linear layouts: c_fc.weight [4E, E], c_proj.weight [E, 4E].
    # (The module zero-inits c_proj; tests use nonzero weights so the second
    #  matmul and the relu^2 path are actually exercised.)
    w_fc = jax.random.normal(k1, (H, E), dtype=jnp.float32) / jnp.sqrt(E)
    w_proj = jax.random.normal(k2, (E, H), dtype=jnp.float32) / jnp.sqrt(H)

    w1, w2 = prepare_mlp_params(w_fc, w_proj, compute_dtype=jnp.bfloat16)
    out = jax.block_until_ready(mlp_forward(x, w1, w2))
    assert out.shape == (B, T, E)
    assert out.dtype == x.dtype
    assert jnp.allclose(out, mlp_reference_bf16(x, w_fc, w_proj),
                        atol=2e-2, rtol=2e-2), "bf16 mismatch (direct path)"
    assert jnp.allclose(out, mlp_reference(x, w_fc, w_proj),
                        atol=1e-1, rtol=1e-1), "f32 ref mismatch (direct path)"

    # ---- 2) exercise the chunked path (th=256, multiple of 256) ------------
    B2, T2, E2 = 2, 12, 128           # M=24 divides evenly -> no padding
    H2 = 4 * E2                       # 512 -> two 256-wide hidden chunks
    kx2, k3, k4 = jax.random.split(jax.random.PRNGKey(1), 3)
    x2 = jax.random.normal(kx2, (B2, T2, E2), dtype=jnp.float32)
    w_fc2 = jax.random.normal(k3, (H2, E2), dtype=jnp.float32) / jnp.sqrt(E2)
    w_proj2 = jax.random.normal(k4, (E2, H2), dtype=jnp.float32) / jnp.sqrt(H2)
    w1b, w2b = prepare_mlp_params(w_fc2, w_proj2, compute_dtype=jnp.bfloat16)
    out2 = jax.block_until_ready(mlp_forward(x2, w1b, w2b, th=256))
    assert out2.shape == (B2, T2, E2)
    assert jnp.allclose(out2, mlp_reference_bf16(x2, w_fc2, w_proj2),
                        atol=2e-2, rtol=2e-2), "chunked mismatch"

    # ---- 3) exercise the ragged/padded-M path (M=5) -------------------------
    B3, T3, E3 = 1, 5, 32
    H3 = 4 * E3
    kx3, k5, k6 = jax.random.split(jax.random.PRNGKey(2), 3)
    x3 = jax.random.normal(kx3, (B3, T3, E3), dtype=jnp.float32)
    w_fc3 = jax.random.normal(k5, (H3, E3), dtype=jnp.float32) / jnp.sqrt(E3)
    w_proj3 = jax.random.normal(k6, (E3, H3), dtype=jnp.float32) / jnp.sqrt(H3)
    w1c, w2c = prepare_mlp_params(w_fc3, w_proj3, compute_dtype=jnp.bfloat16)
    out3 = jax.block_until_ready(mlp_forward(x3, w1c, w2c))
    assert out3.shape == (B3, T3, E3)
    assert jnp.allclose(out3, mlp_reference_bf16(x3, w_fc3, w_proj3),
                        atol=2e-2, rtol=2e-2), "padded-M mismatch"

    print("KERNEL_OK")
</pallas_src>

<mosaic_0001>
module attributes {stable_mosaic.version = 11 : i64} {
  func.func @_mlp_kernel_direct(%arg0: i32, %arg1: memref<16x32xf32, #tpu.memory_space<vmem>>, %arg2: memref<32x128xbf16, #tpu.memory_space<vmem>>, %arg3: memref<128x32xbf16, #tpu.memory_space<vmem>>, %arg4: memref<16x32xf32, #tpu.memory_space<vmem>>) attributes {dimension_semantics = [#tpu.dimension_semantics<parallel>], iteration_bounds = array<i64: 1>, scalar_prefetch = 0 : i64, scratch_operands = 0 : i64, tpu.core_type = #tpu.core_type<tc>, window_params = [{transform_indices = @transform_0, window_bounds = array<i64: 16, 32>}, {pipeline_mode = #tpu.pipeline_mode<synchronous>, transform_indices = @transform_1, window_bounds = array<i64: 32, 128>}, {pipeline_mode = #tpu.pipeline_mode<synchronous>, transform_indices = @transform_2, window_bounds = array<i64: 128, 32>}, {transform_indices = @transform_3, window_bounds = array<i64: 16, 32>}]} {
    %c0 = arith.constant 0 : index
    %c0_0 = arith.constant 0 : index
    %0 = vector.load %arg1[%c0, %c0_0] : memref<16x32xf32, #tpu.memory_space<vmem>>, vector<16x32xf32>
    %1 = arith.truncf %0 : vector<16x32xf32> to vector<16x32xbf16>
    %c0_1 = arith.constant 0 : index
    %c0_2 = arith.constant 0 : index
    %2 = vector.load %arg2[%c0_1, %c0_2] : memref<32x128xbf16, #tpu.memory_space<vmem>>, vector<32x128xbf16>
    %cst = arith.constant dense<0.000000e+00> : vector<16x128xf32>
    %3 = tpu.matmul %1, %2, %cst {dimension_numbers = #tpu.dot_dimension_numbers<[1], [0], [0], [1], [0, 0, 1, 1], [], []>} : vector<16x32xbf16>, vector<32x128xbf16>, vector<16x128xf32> -> vector<16x128xf32>
    %cst_3 = arith.constant 0.000000e+00 : f32
    %4 = vector.broadcast %cst_3 : f32 to vector<16x128xf32>
    %5 = arith.maximumf %3, %4 : vector<16x128xf32>
    %6 = arith.mulf %5, %5 : vector<16x128xf32>
    %7 = arith.truncf %6 : vector<16x128xf32> to vector<16x128xbf16>
    %c0_4 = arith.constant 0 : index
    %c0_5 = arith.constant 0 : index
    %8 = vector.load %arg3[%c0_4, %c0_5] : memref<128x32xbf16, #tpu.memory_space<vmem>>, vector<128x32xbf16>
    %cst_6 = arith.constant dense<0.000000e+00> : vector<16x32xf32>
    %9 = tpu.matmul %7, %8, %cst_6 {dimension_numbers = #tpu.dot_dimension_numbers<[1], [0], [0], [1], [0, 0, 1, 1], [], []>} : vector<16x128xbf16>, vector<128x32xbf16>, vector<16x32xf32> -> vector<16x32xf32>
    %c0_7 = arith.constant 0 : index
    %c0_8 = arith.constant 0 : index
    %10 = vector.load %arg4[%c0_7, %c0_8] : memref<16x32xf32, #tpu.memory_space<vmem>>, vector<16x32xf32>
    tpu.vector_store %arg4[%c0_7, %c0_8], %9 {strides = array<i32>} : memref<16x32xf32, #tpu.memory_space<vmem>>, vector<16x32xf32>,
    return
  }
  func.func @transform_0(%arg0: i32) -> (i32, i32) {
    %c0_i32 = arith.constant 0 : i32
    %c0_i32_0 = arith.constant 0 : i32
    return %arg0, %c0_i32 : i32, i32
  }
  func.func @transform_1(%arg0: i32) -> (i32, i32) {
    %c0_i32 = arith.constant 0 : i32
    %c0_i32_0 = arith.constant 0 : i32
    %c0_i32_1 = arith.constant 0 : i32
    return %c0_i32, %c0_i32_0 : i32, i32
  }
  func.func @transform_2(%arg0: i32) -> (i32, i32) {
    %c0_i32 = arith.constant 0 : i32
    %c0_i32_0 = arith.constant 0 : i32
    %c0_i32_1 = arith.constant 0 : i32
    return %c0_i32, %c0_i32_0 : i32, i32
  }
  func.func @transform_3(%arg0: i32) -> (i32, i32) {
    %c0_i32 = arith.constant 0 : i32
    %c0_i32_0 = arith.constant 0 : i32
    return %arg0, %c0_i32 : i32, i32
  }
}

</mosaic_0001>

<llo_original>
// kernel: tpu_custom_call.1
$region0: #{tpu_custom_call.1}
  #allocation0 [shape = 'u32[]', space=smem, size = 0x4, offset = 0x4, fixed_abs, tag = 'smem constant byte address 0x4 - core index']
  #allocation1 [shape = 'u32[144,128]{1,0:T(1,128)}', space=vmem, size = 0x12000, scoped, tag = 'internal scratch']
  %s0 = inlined_call_operand.vmem [shape: f32[16,32], index: 0, kind: input, shape index: {}]
  %s1 = inlined_call_operand.vmem [shape: bf16[32,128], index: 1, kind: input, shape index: {}]
  %s2 = inlined_call_operand.vmem [shape: bf16[128,32], index: 2, kind: input, shape index: {}]
  %s3 = inlined_call_operand.hbm [shape: f32[16,32], index: 3, kind: output, shape index: {}]
  %s4 = sld [smem:[#allocation0]]
  $region22: #{tpu_custom_call.1} parent=0
    _
  %s6 = ssub.s32 1, %s4
  %s7 = scalar_select 0, %s6, %s4
  $region1: #{tpu_custom_call.1} parent=0
    #allocation2 [shape = 'u8[8192]{0}', space=vmem, size = 0x2000, scoped, tag = 'output window, operand 0, single buffered']
    #allocation3 [shape = 's32[1]{0}', space=sflag, size = 0x4, scoped, tag = 'scoped memory for tpu_custom_call.1']
    %8 = vsyncpa [#allocation3], 0
    // Predicated region
    $region2: #{tpu_custom_call.1} parent=1 // pred_check
      _
    $region3: #{tpu_custom_call.1} parent=1 // pred_check_branch
      %10 = sbr.rel (0) target = $region5
    $region4: #{tpu_custom_call.1} parent=1 // pred_region
      _
    $region5: #{tpu_custom_call.1} parent=1 // pred_fallthru
      _
    // Predicated region
    $region6: #{tpu_custom_call.1} parent=1 // pred_check
      _
    $region7: #{tpu_custom_call.1} parent=1 // pred_check_branch
      %12 = sbr.rel (0) target = $region9
    $region8: #{tpu_custom_call.1} parent=1 // pred_region
      _
    $region9: #{tpu_custom_call.1} parent=1 // pred_fallthru
      _
    // Predicated region
    $region10: #{tpu_custom_call.1} parent=1 // pred_check
      _
    $region11: #{tpu_custom_call.1} parent=1 // pred_check_branch
      %14 = sbr.rel (0) target = $region13
    $region12: #{tpu_custom_call.1} parent=1 // pred_region
      _
    $region13: #{tpu_custom_call.1} parent=1 // pred_fallthru
      _
    %v16 = vld [vmem:[%s0] sm:$0xff]
    %v17 = vld [vmem:[%s0 + $0x8] sm:$0xff]
    %v18 = vpack.c.bf16 %v17, %v16
    %v19 = vld [vmem:[%s1] sm:$0xf]
    %v20 = vld [vmem:[%s1 + $0x4] sm:$0xf]
    %v21 = vld [vmem:[%s1 + $0x8] sm:$0xf]
    %v22 = vld [vmem:[%s1 + $0xc] sm:$0xf]
    %v27 = vunpack.c.l.b16 %v19
    %v28 = vunpack.c.l.b16 %v20
    %v29 = vunpack.c.l.b16 %v21
    %v30 = vunpack.c.l.b16 %v22
    %v31 = vpack.c.b16 %v28, %v27
    %v32 = vpack.c.b16 %v30, %v29
    %vm35 = vcmask 261120
    %v37 = vsel %vm35, %v18, 0
    %39 = vmatprep.subr.bf16.mxu0 0
    %40 = vmatpush1.bf16.msra.mxu0 %v31
    %41 = vmatprep.subr.bf16.mxu0 0
    %42 = vmatpush1.bf16.msra.mxu0 %v32
    %43 = vmatprep.subr.bf16.mxu0 0
    %44 = vmatpush1.bf16.msra.mxu0 0
    %45 = vmatprep.subr.bf16.mxu0 0
    %46 = vmatpush1.bf16.msra.mxu0 0
    %47 = vmatprep.subr.bf16.mxu0 0
    %48 = vmatpush1.bf16.msra.mxu0 0
    %49 = vmatprep.subr.bf16.mxu0 0
    %50 = vmatpush1.bf16.msra.mxu0 0
    %51 = vmatprep.subr.bf16.mxu0 0
    %52 = vmatpush1.bf16.msra.mxu0 0
    %53 = vmatprep.subr.bf16.mxu0 0
    %54 = vmatpush1.bf16.msra.mxu0 0
    %55 = vmatprep.subr.bf16.mxu0 0
    %56 = vmatpush1.bf16.msra.mxu0 0
    %57 = vmatprep.subr.bf16.mxu0 0
    %58 = vmatpush1.bf16.msra.mxu0 0
    %59 = vmatprep.subr.bf16.mxu0 0
    %60 = vmatpush1.bf16.msra.mxu0 0
    %61 = vmatprep.subr.bf16.mxu0 0
    %62 = vmatpush1.bf16.msra.mxu0 0
    %63 = vmatprep.subr.bf16.mxu0 0
    %64 = vmatpush1.bf16.msra.mxu0 0
    %65 = vmatprep.subr.bf16.mxu0 0
    %66 = vmatpush1.bf16.msra.mxu0 0
    %67 = vmatprep.subr.bf16.mxu0 0
    %68 = vmatpush1.bf16.msra.mxu0 0
    %69 = vmatprep.subr.bf16.mxu0 0
    %70 = vmatpush1.bf16.msra.mxu0 0
    %71 = vmatprep.mubr.bf16.mxu0 0
    %72 = vmatmul.mubr.bf16.gmra.mrb[0].mxu0 %v37
    %v73 = vpop.f32.mrb[0].mxu0
    %v74 = vadd.f32 0.0, %v73
    %v75 = vpop.f32.mrb[0].mxu0
    %v76 = vpop.f32.mrb[0].mxu0
    %v77 = vadd.f32 0.0, %v76
    %v78 = vpop.f32.mrb[0].mxu0
    %79 = vdwg.mxu0
    %v80 = vmax.f32 %v74, 0.0
    %v81 = vmax.f32 %v77, 0.0
    %v82 = vmul.f32 %v80, %v80
    %v83 = vmul.f32 %v81, %v81
    %v84 = vpack.c.bf16 %v83, %v82
    %v85 = vld [vmem:[%s2] sm:$0xf]
    %v86 = vld [vmem:[%s2 + $0x4] sm:$0xf]
    %v87 = vld [vmem:[%s2 + $0x8] sm:$0xf]
    %v88 = vld [vmem:[%s2 + $0xc] sm:$0xf]
    %v89 = vld [vmem:[%s2 + $0x10] sm:$0xf]
    %v90 = vld [vmem:[%s2 + $0x14] sm:$0xf]
    %v91 = vld [vmem:[%s2 + $0x18] sm:$0xf]
    %v92 = vld [vmem:[%s2 + $0x1c] sm:$0xf]
    %v93 = vld [vmem:[%s2 + $0x20] sm:$0xf]
    %v94 = vld [vmem:[%s2 + $0x24] sm:$0xf]
    %v95 = vld [vmem:[%s2 + $0x28] sm:$0xf]
    %v96 = vld [vmem:[%s2 + $0x2c] sm:$0xf]
    %v97 = vld [vmem:[%s2 + $0x30] sm:$0xf]
    %v98 = vld [vmem:[%s2 + $0x34] sm:$0xf]
    %v99 = vld [vmem:[%s2 + $0x38] sm:$0xf]
    %v100 = vld [vmem:[%s2 + $0x3c] sm:$0xf]
    %v117 = vunpack.c.l.b16 %v85
    %v118 = vunpack.c.l.b16 %v86
    %v119 = vunpack.c.l.b16 %v87
    %v120 = vunpack.c.l.b16 %v88
    %v121 = vunpack.c.l.b16 %v89
    %v122 = vunpack.c.l.b16 %v90
    %v123 = vunpack.c.l.b16 %v91
    %v124 = vunpack.c.l.b16 %v92
    %v125 = vunpack.c.l.b16 %v93
    %v126 = vunpack.c.l.b16 %v94
    %v127 = vunpack.c.l.b16 %v95
    %v128 = vunpack.c.l.b16 %v96
    %v129 = vunpack.c.l.b16 %v97
    %v130 = vunpack.c.l.b16 %v98
    %v131 = vunpack.c.l.b16 %v99
    %v132 = vunpack.c.l.b16 %v100
    %v133 = vpack.c.b16 %v118, %v117
    %v134 = vpack.c.b16 %v120, %v119
    %v135 = vpack.c.b16 %v122, %v121
    %v136 = vpack.c.b16 %v124, %v123
    %v137 = vpack.c.b16 %v126, %v125
    %v138 = vpack.c.b16 %v128, %v127
    %v139 = vpack.c.b16 %v130, %v129
    %v140 = vpack.c.b16 %v132, %v131
    %149 = vmatprep.subr.bf16.mxu0 0
    %150 = vmatpush1.bf16.msra.mxu0 %v133
    %151 = vmatprep.subr.bf16.mxu0 0
    %152 = vmatpush1.bf16.msra.mxu0 %v134
    %153 = vmatprep.subr.bf16.mxu0 0
    %154 = vmatpush1.bf16.msra.mxu0 %v135
    %155 = vmatprep.subr.bf16.mxu0 0
    %156 = vmatpush1.bf16.msra.mxu0 %v136
    %157 = vmatprep.subr.bf16.mxu0 0
    %158 = vmatpush1.bf16.msra.mxu0 %v137
    %159 = vmatprep.subr.bf16.mxu0 0
    %160 = vmatpush1.bf16.msra.mxu0 %v138
    %161 = vmatprep.subr.bf16.mxu0 0
    %162 = vmatpush1.bf16.msra.mxu0 %v139
    %163 = vmatprep.subr.bf16.mxu0 0
    %164 = vmatpush1.bf16.msra.mxu0 %v140
    %165 = vmatprep.subr.bf16.mxu0 0
    %166 = vmatpush1.bf16.msra.mxu0 0
    %167 = vmatprep.subr.bf16.mxu0 0
    %168 = vmatpush1.bf16.msra.mxu0 0
    %169 = vmatprep.subr.bf16.mxu0 0
    %170 = vmatpush1.bf16.msra.mxu0 0
    %171 = vmatprep.subr.bf16.mxu0 0
    %172 = vmatpush1.bf16.msra.mxu0 0
    %173 = vmatprep.subr.bf16.mxu0 0
    %174 = vmatpush1.bf16.msra.mxu0 0
    %175 = vmatprep.subr.bf16.mxu0 0
    %176 = vmatpush1.bf16.msra.mxu0 0
    %177 = vmatprep.subr.bf16.mxu0 0
    %178 = vmatpush1.bf16.msra.mxu0 0
    %179 = vmatprep.subr.bf16.mxu0 0
    %180 = vmatpush1.bf16.msra.mxu0 0
    %181 = vmatprep.mubr.bf16.mxu0 0
    %182 = vmatmul.mubr.bf16.gmra.mrb[0].mxu0 %v84
    %v183 = vpop.f32.mrb[0].mxu0
    %v184 = vadd.f32 0.0, %v183
    %v185 = vpop.f32.mrb[0].mxu0
    %v186 = vpop.f32.mrb[0].mxu0
    %v187 = vadd.f32 0.0, %v186
    %v188 = vpop.f32.mrb[0].mxu0
    %189 = vdwg.mxu0
    %190 = vst.msk [vmem:[#allocation2] sm:$0xff] %vm35, %v184
    %191 = vst.msk [vmem:[#allocation2 + $0x8] sm:$0xff] %vm35, %v187
    // Predicated region
    $region14: #{tpu_custom_call.1} parent=1 // pred_check
      _
    $region15: #{tpu_custom_call.1} parent=1 // pred_check_branch
      %193 = sbr.rel (0) target = $region17
    $region16: #{tpu_custom_call.1} parent=1 // pred_region
      %s195 = ssub.s32 256, 256
      %196 = vsyncadd [#allocation3], %s195
      %s197 = sshll.u32 [#allocation2], 4
      %s198 = int_to_ptr.vmem [resolvable:$true] %s197
      %203 = dma.vmem_to_hbm [thread:$0]  %s198, 256, %s3, [#allocation3], 128, 128, 8
    $region17: #{tpu_custom_call.1} parent=1 // pred_fallthru
      _
    // Predicated region
    $region18: #{tpu_custom_call.1} parent=1 // pred_check
      _
    $region19: #{tpu_custom_call.1} parent=1 // pred_check_branch
      %205 = sbr.rel (0) target = $region21
    $region20: #{tpu_custom_call.1} parent=1 // pred_region
      %206 = dma.done [#allocation3], 256
    $region21: #{tpu_custom_call.1} parent=1 // pred_fallthru
      _
    %207 = vsyncpa [#allocation3], 1

</llo_original>
